<compile_context>
chip_gen: v6e
topology: v6e:2x2x1
jax: 0.10.0
libtpu: 0.0.40
codegen_flags: <defaults>
</compile_context>

<pallas_src>
import functools

import jax
import jax.numpy as jnp
from jax import lax
from jax.experimental import pallas as pl
from jax.experimental.pallas import tpu as pltpu

_SMOOTH = 1e-08
_LANE = 128
_SUBLANE = 8


def _dice_partial_kernel(pred_ref, target_ref, out_ref, *,
                         tile_rows, valid_rows_last, partial_last):
    """Accumulate [intersection, union] partial sums into the resident out block.

    out_ref block shape: (1, 2, 8, 128) f32, resident across the inner
    (reduction) grid axis -> it acts as the accumulator.
      out_ref[0, 0] : running sum of pred * target   (intersection terms)
      out_ref[0, 1] : running sum of pred + target   (union: sum(p) + sum(t))
    """
    s = pl.program_id(0)
    j = pl.program_id(1)

    @pl.when(j == 0)
    def _init():
        out_ref[...] = jnp.zeros_like(out_ref)

    p = pred_ref[...].astype(jnp.float32)
    t = target_ref[...].astype(jnp.float32)

    def accumulate(pt, pu):
        if tile_rows % _SUBLANE == 0:
            # VPU-only fold (tile_rows,128) -> (8,128); the single cross-lane
            # reduction happens once, outside the kernel, on tiny data.
            out_ref[0, 0, :, :] += pt.reshape(-1, _SUBLANE, _LANE).sum(axis=0)
            out_ref[0, 1, :, :] += pu.reshape(-1, _SUBLANE, _LANE).sum(axis=0)
        else:
            # Single small full-array block (rows < 8 or not a multiple of 8):
            # fold everything into sublane row 0.  Perf irrelevant here.
            out_ref[0, 0, 0:1, :] += pt.sum(axis=0, keepdims=True)
            out_ref[0, 1, 0:1, :] += pu.sum(axis=0, keepdims=True)

    if partial_last:
        # Only the very last logical block is ragged; gate the iota/compare/
        # select work so every other grid step stays pure mul/add (DMA-bound).
        is_last = jnp.logical_and(s == pl.num_programs(0) - 1,
                                  j == pl.num_programs(1) - 1)

        @pl.when(is_last)
        def _masked():
            # Mask AFTER the arithmetic: garbage rows (possibly NaN/Inf) in
            # the partial block are selected away, never fed back into sums.
            row_ids = lax.broadcasted_iota(jnp.int32, p.shape, 0)
            valid = row_ids < valid_rows_last
            accumulate(jnp.where(valid, p * t, 0.0),
                       jnp.where(valid, p + t, 0.0))

        @pl.when(jnp.logical_not(is_last))
        def _fast():
            accumulate(p * t, p + t)
    else:
        accumulate(p * t, p + t)


def _device_is_v7():
    try:
        return "v7" in jax.devices()[0].device_kind.lower()
    except Exception:
        return False


def semantic_dice_loss(pred, target, *, tile_rows=None, num_splits=None):
    """Dice loss: 1 - (2*sum(p*t) + eps) / (sum(p) + sum(t) + eps).

    pred/target may have any shape and dtype (bf16 accepted as-is; the kernel
    accumulates in f32).
    """
    assert pred.shape == target.shape, "pred/target must have identical shapes"

    pred_flat = pred.reshape(-1)
    target_flat = target.reshape(-1)
    n = pred_flat.shape[0]

    # Lane-aligned prefix streamed through the kernel; tiny (<128 elem) tail
    # summed directly with jnp.  No jnp.pad -> no O(N) input copy.
    rows = n // _LANE
    aligned = rows * _LANE

    if aligned < n:
        tail_p = pred_flat[aligned:].astype(jnp.float32)
        tail_t = target_flat[aligned:].astype(jnp.float32)
        tail_inter = jnp.sum(tail_p * tail_t)
        tail_union = jnp.sum(tail_p) + jnp.sum(tail_t)
        pred_main = pred_flat[:aligned]
        target_main = target_flat[:aligned]
    else:
        tail_inter = jnp.float32(0.0)
        tail_union = jnp.float32(0.0)
        pred_main = pred_flat
        target_main = target_flat

    if rows == 0:
        # Whole input fit in the tail; nothing to launch.
        intersection = tail_inter
        union = tail_union
    else:
        pred2d = pred_main.reshape(rows, _LANE)
        target2d = target_main.reshape(rows, _LANE)

        is_v7 = _device_is_v7()

        # Tile sizing: 4096 rows f32 = 2 MiB / input block (8 MiB
        # double-buffered over both inputs); 8192 rows on v7x = 16 MiB, still
        # well under the 32 MiB scoped-VMEM limit set below.
        if tile_rows is None:
            tile_rows = 8192 if is_v7 else 4096
        tile_rows = max(_SUBLANE, (tile_rows // _SUBLANE) * _SUBLANE)
        if tile_rows >= rows:
            tile_rows = rows              # single full-array block

        blocks_total = pl.cdiv(rows, tile_rows)

        # Outer split: one per TensorCore (2 on v7x, 1 on v5e/v6e).  Only
        # split when the block count divides exactly so no duplicated-block
        # DMA is ever issued; otherwise fall back to one sequential sweep.
        # TODO(synk): if a v7x trace shows one TC doing all inner steps with
        # plain "parallel", switch the leading axis to pltpu.CORE_PARALLEL.
        if num_splits is None:
            num_splits = 2 if is_v7 else 1
        num_splits = max(1, min(num_splits, blocks_total))
        if blocks_total % num_splits != 0:
            num_splits = 1
        inner = blocks_total // num_splits

        partial_last = (rows % tile_rows) != 0
        valid_rows_last = rows - (blocks_total - 1) * tile_rows

        kernel = functools.partial(
            _dice_partial_kernel,
            tile_rows=tile_rows,
            valid_rows_last=valid_rows_last,
            partial_last=partial_last)

        def in_index_map(s, j, inner=inner):
            return (s * inner + j, 0)

        bytes_accessed = int(
            rows * _LANE * (jnp.dtype(pred2d.dtype).itemsize
                            + jnp.dtype(target2d.dtype).itemsize)
            + num_splits * 2 * _SUBLANE * _LANE * 4)
        cost = pl.CostEstimate(flops=3 * rows * _LANE,
                               transcendentals=0,
                               bytes_accessed=bytes_accessed)

        partials = pl.pallas_call(
            kernel,
            out_shape=jax.ShapeDtypeStruct(
                (num_splits, 2, _SUBLANE, _LANE), jnp.float32),
            grid_spec=pltpu.PrefetchScalarGridSpec(
                num_scalar_prefetch=0,
                grid=(num_splits, inner),
                in_specs=[
                    pl.BlockSpec((tile_rows, _LANE), in_index_map),
                    pl.BlockSpec((tile_rows, _LANE), in_index_map),
                ],
                out_specs=pl.BlockSpec(
                    (1, 2, _SUBLANE, _LANE), lambda s, j: (s, 0, 0, 0)),
            ),
            compiler_params=pltpu.CompilerParams(
                # Outer split axis parallel (megacore on v7x); inner reduction
                # axis must stay sequential for the resident accumulator.
                dimension_semantics=("parallel", "arbitrary"),
                vmem_limit_bytes=32 * 1024 * 1024,
            ),
            cost_estimate=cost,
        )(pred2d, target2d)

        # Tiny final combine outside the kernel.
        sums = jnp.sum(partials, axis=(0, 2, 3))    # (2,) [intersection, union]
        intersection = sums[0] + tail_inter
        union = sums[1] + tail_union

    dice = (2.0 * intersection + _SMOOTH) / (union + _SMOOTH)
    return 1.0 - dice


def _reference_dice_loss(pred, target):
    pred_flat = pred.reshape(-1).astype(jnp.float32)
    target_flat = target.reshape(-1).astype(jnp.float32)
    intersection = jnp.sum(pred_flat * target_flat)
    union = jnp.sum(pred_flat) + jnp.sum(target_flat)
    dice = (2.0 * intersection + _SMOOTH) / (union + _SMOOTH)
    return 1.0 - dice


if __name__ == "__main__":
    key = jax.random.PRNGKey(0)

    def make_pair(k, shape):
        k_p, k_t = jax.random.split(k)
        p = jax.nn.sigmoid(jax.random.normal(k_p, shape, dtype=jnp.float32))
        t = (jax.random.uniform(k_t, shape, dtype=jnp.float32) > 0.5
             ).astype(jnp.float32)
        return p, t

    keys = jax.random.split(key, 4)

    # 1) Main NCHW case (n multiple of 128 -> zero-copy fast path).
    p1, t1 = make_pair(keys[0], (2, 4, 16, 16))
    loss1 = jax.block_until_ready(semantic_dice_loss(p1, t1))
    ref1 = _reference_dice_loss(p1, t1)
    assert jnp.allclose(loss1, ref1, rtol=1e-5, atol=1e-6), (loss1, ref1)

    # 2) Multi-block with a ragged last block (exercises the gated mask path).
    p2, t2 = make_pair(keys[1], (2, 3, 40, 40))       # 9600 elems -> 75 rows
    loss2 = jax.block_until_ready(
        semantic_dice_loss(p2, t2, tile_rows=16, num_splits=1))
    ref2 = _reference_dice_loss(p2, t2)
    assert jnp.allclose(loss2, ref2, rtol=1e-5, atol=1e-6), (loss2, ref2)

    # 3) Two-way split with exact block division + ragged last block.
    p3, t3 = make_pair(keys[2], (2, 53, 64))          # 6784 elems -> 53 rows
    loss3 = jax.block_until_ready(
        semantic_dice_loss(p3, t3, tile_rows=16, num_splits=2))
    ref3 = _reference_dice_loss(p3, t3)
    assert jnp.allclose(loss3, ref3, rtol=1e-5, atol=1e-6), (loss3, ref3)

    # 4) Non-128-aligned flat length (exercises the jnp tail path).
    p4, t4 = make_pair(keys[3], (1, 1, 13, 29))       # 377 elems
    loss4 = jax.block_until_ready(semantic_dice_loss(p4, t4))
    ref4 = _reference_dice_loss(p4, t4)
    assert jnp.allclose(loss4, ref4, rtol=1e-5, atol=1e-6), (loss4, ref4)

    print("KERNEL_OK")
</pallas_src>

<mosaic_0001>
module attributes {stable_mosaic.version = 11 : i64} {
  func.func @_dice_partial_kernel(%arg0: i32, %arg1: i32, %arg2: memref<16x128xf32, #tpu.memory_space<vmem>>, %arg3: memref<16x128xf32, #tpu.memory_space<vmem>>, %arg4: memref<1x2x8x128xf32, #tpu.memory_space<vmem>>) attributes {dimension_semantics = [#tpu.dimension_semantics<parallel>, #tpu.dimension_semantics<arbitrary>], iteration_bounds = array<i64: 1, 1>, scalar_prefetch = 0 : i64, scratch_operands = 0 : i64, tpu.core_type = #tpu.core_type<tc>, window_params = [{transform_indices = @transform_0, window_bounds = array<i64: 16, 128>}, {transform_indices = @transform_1, window_bounds = array<i64: 16, 128>}, {transform_indices = @transform_2, window_bounds = array<i64: 1, 2, 8, 128>}]} {
    %c0_i32 = arith.constant 0 : i32
    %0 = arith.cmpi eq, %arg1, %c0_i32 : i32
    %1 = arith.extui %0 : i1 to i32
    %c0_i32_0 = arith.constant 0 : i32
    %2 = arith.cmpi ne, %1, %c0_i32_0 : i32
    scf.if %2 {
      %cst_20 = arith.constant 0.000000e+00 : f32
      %23 = vector.broadcast %cst_20 : f32 to vector<1x2x8x128xf32>
      %c0_21 = arith.constant 0 : index
      %c0_22 = arith.constant 0 : index
      %c0_23 = arith.constant 0 : index
      %c0_24 = arith.constant 0 : index
      %24 = vector.load %arg4[%c0_21, %c0_22, %c0_23, %c0_24] : memref<1x2x8x128xf32, #tpu.memory_space<vmem>>, vector<1x2x8x128xf32>
      tpu.vector_store %arg4[%c0_21, %c0_22, %c0_23, %c0_24], %23 {strides = array<i32>} : memref<1x2x8x128xf32, #tpu.memory_space<vmem>>, vector<1x2x8x128xf32>,
    } else {
    }
    %c0 = arith.constant 0 : index
    %c0_1 = arith.constant 0 : index
    %3 = vector.load %arg2[%c0, %c0_1] : memref<16x128xf32, #tpu.memory_space<vmem>>, vector<16x128xf32>
    %c0_2 = arith.constant 0 : index
    %c0_3 = arith.constant 0 : index
    %4 = vector.load %arg3[%c0_2, %c0_3] : memref<16x128xf32, #tpu.memory_space<vmem>>, vector<16x128xf32>
    %5 = arith.mulf %3, %4 : vector<16x128xf32>
    %6 = arith.addf %3, %4 : vector<16x128xf32>
    %c0_4 = arith.constant 0 : index
    %c0_5 = arith.constant 0 : index
    %c0_6 = arith.constant 0 : index
    %c0_7 = arith.constant 0 : index
    %7 = vector.load %arg4[%c0_4, %c0_5, %c0_6, %c0_7] : memref<1x2x8x128xf32, #tpu.memory_space<vmem>>, vector<1x1x8x128xf32>
    %8 = vector.shape_cast %7 : vector<1x1x8x128xf32> to vector<8x128xf32>
    %9 = vector.shape_cast %5 : vector<16x128xf32> to vector<2x8x128xf32>
    %cst = arith.constant dense<0.000000e+00> : vector<8x128xf32>
    %10 = vector.multi_reduction <add>, %9, %cst [0] : vector<2x8x128xf32> to vector<8x128xf32>
    %11 = arith.addf %8, %10 : vector<8x128xf32>
    %c0_8 = arith.constant 0 : index
    %c0_9 = arith.constant 0 : index
    %c0_10 = arith.constant 0 : index
    %c0_11 = arith.constant 0 : index
    %12 = vector.load %arg4[%c0_8, %c0_9, %c0_10, %c0_11] : memref<1x2x8x128xf32, #tpu.memory_space<vmem>>, vector<1x1x8x128xf32>
    %13 = vector.shape_cast %12 : vector<1x1x8x128xf32> to vector<8x128xf32>
    %14 = vector.shape_cast %11 : vector<8x128xf32> to vector<1x1x8x128xf32>
    tpu.vector_store %arg4[%c0_8, %c0_9, %c0_10, %c0_11], %14 {strides = array<i32>} : memref<1x2x8x128xf32, #tpu.memory_space<vmem>>, vector<1x1x8x128xf32>,
    %c0_12 = arith.constant 0 : index
    %c1 = arith.constant 1 : index
    %c0_13 = arith.constant 0 : index
    %c0_14 = arith.constant 0 : index
    %15 = vector.load %arg4[%c0_12, %c1, %c0_13, %c0_14] : memref<1x2x8x128xf32, #tpu.memory_space<vmem>>, vector<1x1x8x128xf32>
    %16 = vector.shape_cast %15 : vector<1x1x8x128xf32> to vector<8x128xf32>
    %17 = vector.shape_cast %6 : vector<16x128xf32> to vector<2x8x128xf32>
    %cst_15 = arith.constant dense<0.000000e+00> : vector<8x128xf32>
    %18 = vector.multi_reduction <add>, %17, %cst_15 [0] : vector<2x8x128xf32> to vector<8x128xf32>
    %19 = arith.addf %16, %18 : vector<8x128xf32>
    %c0_16 = arith.constant 0 : index
    %c1_17 = arith.constant 1 : index
    %c0_18 = arith.constant 0 : index
    %c0_19 = arith.constant 0 : index
    %20 = vector.load %arg4[%c0_16, %c1_17, %c0_18, %c0_19] : memref<1x2x8x128xf32, #tpu.memory_space<vmem>>, vector<1x1x8x128xf32>
    %21 = vector.shape_cast %20 : vector<1x1x8x128xf32> to vector<8x128xf32>
    %22 = vector.shape_cast %19 : vector<8x128xf32> to vector<1x1x8x128xf32>
    tpu.vector_store %arg4[%c0_16, %c1_17, %c0_18, %c0_19], %22 {strides = array<i32>} : memref<1x2x8x128xf32, #tpu.memory_space<vmem>>, vector<1x1x8x128xf32>,
    return
  }
  func.func @transform_0(%arg0: i32, %arg1: i32) -> (i32, i32) {
    %c1_i32 = arith.constant 1 : i32
    %0 = arith.muli %arg0, %c1_i32 : i32
    %1 = arith.addi %0, %arg1 : i32
    %c0_i32 = arith.constant 0 : i32
    %c0_i32_0 = arith.constant 0 : i32
    return %1, %c0_i32 : i32, i32
  }
  func.func @transform_1(%arg0: i32, %arg1: i32) -> (i32, i32) {
    %c1_i32 = arith.constant 1 : i32
    %0 = arith.muli %arg0, %c1_i32 : i32
    %1 = arith.addi %0, %arg1 : i32
    %c0_i32 = arith.constant 0 : i32
    %c0_i32_0 = arith.constant 0 : i32
    return %1, %c0_i32 : i32, i32
  }
  func.func @transform_2(%arg0: i32, %arg1: i32) -> (i32, i32, i32, i32) {
    %c0_i32 = arith.constant 0 : i32
    %c0_i32_0 = arith.constant 0 : i32
    %c0_i32_1 = arith.constant 0 : i32
    %c0_i32_2 = arith.constant 0 : i32
    return %arg0, %c0_i32, %c0_i32_0, %c0_i32_1 : i32, i32, i32, i32
  }
}

</mosaic_0001>

<llo_original>
// kernel: tpu_custom_call.1
$region0: #{tpu_custom_call.1}
  #allocation0 [shape = 'u32[]', space=smem, size = 0x4, offset = 0x4, fixed_abs, tag = 'smem constant byte address 0x4 - core index']
  #allocation1 [shape = 'u32[144,128]{1,0:T(1,128)}', space=vmem, size = 0x12000, scoped, tag = 'internal scratch']
  %s0 = inlined_call_operand.hbm [shape: f32[16,128], index: 0, kind: input, shape index: {}]
  %s1 = inlined_call_operand.hbm [shape: f32[16,128], index: 1, kind: input, shape index: {}]
  %s2 = inlined_call_operand.hbm [shape: f32[1,2,8,128], index: 2, kind: output, shape index: {}]
  %s3 = sld [smem:[#allocation0]]
  $region30: #{tpu_custom_call.1} parent=0
    _
  %s5 = ssub.s32 1, %s3
  %s6 = scalar_select 0, %s5, %s3
  $region1: #{tpu_custom_call.1} parent=0
    #allocation2 [shape = 'u8[8192]{0}', space=vmem, size = 0x2000, scoped, tag = 'input window, operand 0, single buffered']
    #allocation3 [shape = 's32[1]{0}', space=sflag, size = 0x4, scoped, tag = 'scoped memory for tpu_custom_call.1']
    #allocation4 [shape = 's32[1]{0}', space=sflag, size = 0x4, scoped, tag = 'scoped memory for tpu_custom_call.1']
    #allocation5 [shape = 'u8[8192]{0}', space=vmem, size = 0x2000, scoped, tag = 'input window, operand 1, single buffered']
    #allocation6 [shape = 's32[1]{0}', space=sflag, size = 0x4, scoped, tag = 'scoped memory for tpu_custom_call.1']
    #allocation7 [shape = 'u8[8192]{0}', space=vmem, size = 0x2000, scoped, tag = 'output window, operand 0, single buffered']
    %7 = vsyncpa [#allocation3], 0
    %8 = vsyncpa [#allocation6], 0
    %9 = vsyncpa [#allocation4], 0
    // Predicated region
    $region2: #{tpu_custom_call.1} parent=1 // pred_check
      _
    $region3: #{tpu_custom_call.1} parent=1 // pred_check_branch
      %11 = sbr.rel (0) target = $region5
    $region4: #{tpu_custom_call.1} parent=1 // pred_region
      %s12 = sadd.s32 0, 0
      %s13 = smul.u32 2, %s12
      %s15 = ssub.s32 256, 256
      %16 = vsyncadd [#allocation3], %s15
      %s17 = smul.addr %s13, 128
      %s18 = scalar_lea.hbm %s0, %s17
      %s19 = sshll.u32 [#allocation2], 4
      %s20 = int_to_ptr.vmem [resolvable:$true] %s19
      %25 = dma.hbm_to_vmem [thread:$0]  %s18, 256, %s20, [#allocation3], 128, 128, 8
    $region5: #{tpu_custom_call.1} parent=1 // pred_fallthru
      _
    // Predicated region
    $region6: #{tpu_custom_call.1} parent=1 // pred_check
      _
    $region7: #{tpu_custom_call.1} parent=1 // pred_check_branch
      %27 = sbr.rel (0) target = $region9
    $region8: #{tpu_custom_call.1} parent=1 // pred_region
      %s28 = sadd.s32 0, 0
      %s29 = smul.u32 2, %s28
      %s31 = ssub.s32 256, 256
      %32 = vsyncadd [#allocation6], %s31
      %s33 = smul.addr %s29, 128
      %s34 = scalar_lea.hbm %s1, %s33
      %s35 = sshll.u32 [#allocation5], 4
      %s36 = int_to_ptr.vmem [resolvable:$true] %s35
      %41 = dma.hbm_to_vmem [thread:$0]  %s34, 256, %s36, [#allocation6], 128, 128, 8
    $region9: #{tpu_custom_call.1} parent=1 // pred_fallthru
      _
    // Predicated region
    $region10: #{tpu_custom_call.1} parent=1 // pred_check
      _
    $region11: #{tpu_custom_call.1} parent=1 // pred_check_branch
      %43 = sbr.rel (0) target = $region13
    $region12: #{tpu_custom_call.1} parent=1 // pred_region
      %44 = dma.done [#allocation3], 256
    $region13: #{tpu_custom_call.1} parent=1 // pred_fallthru
      _
    // Predicated region
    $region14: #{tpu_custom_call.1} parent=1 // pred_check
      _
    $region15: #{tpu_custom_call.1} parent=1 // pred_check_branch
      %46 = sbr.rel (0) target = $region17
    $region16: #{tpu_custom_call.1} parent=1 // pred_region
      %47 = dma.done [#allocation6], 256
    $region17: #{tpu_custom_call.1} parent=1 // pred_fallthru
      _
    %s48 = sadd.s32 0, 0
    %s49 = smul.u32 2, %s48
    %s50 = sadd.s32 0, 0
    %s51 = smul.u32 2, %s50
    %p52 = scmp.eq.s32.totalorder 0, 0
    // Predicated region
    $region18: #{tpu_custom_call.1} parent=1 // pred_check
      %p53 = pneg %p52
    $region19: #{tpu_custom_call.1} parent=1 // pred_check_branch
      %55 = sbr.rel (%p53) target = $region21
    $region20: #{tpu_custom_call.1} parent=1 // pred_region
      %56 = vst [vmem:[#allocation7] sm:$0xff] 0.0
      %57 = vst [vmem:[#allocation7 + $0x8] sm:$0xff] 0.0
    $region21: #{tpu_custom_call.1} parent=1 // pred_fallthru
      _
    %v58 = vld [vmem:[#allocation2] sm:$0xff]
    %v59 = vld [vmem:[#allocation2 + $0x8] sm:$0xff]
    %v60 = vld [vmem:[#allocation5] sm:$0xff]
    %v61 = vld [vmem:[#allocation5 + $0x8] sm:$0xff]
    %v62 = vmul.f32 %v58, %v60
    %v63 = vmul.f32 %v59, %v61
    %v64 = vadd.f32 %v58, %v60
    %v65 = vadd.f32 %v59, %v61
    %v66 = vld [vmem:[#allocation7] sm:$0xff]
    %v67 = vadd.f32 %v62, %v63
    %v68 = vadd.f32 %v66, %v67
    %69 = vst [vmem:[#allocation7] sm:$0xff] %v68
    %s70 = scalar_lea.vmem [#allocation7], 8
    %v71 = vld [vmem:[%s70] sm:$0xff]
    %v72 = vadd.f32 %v64, %v65
    %v73 = vadd.f32 %v71, %v72
    %74 = vst [vmem:[%s70] sm:$0xff] %v73
    // Predicated region
    $region22: #{tpu_custom_call.1} parent=1 // pred_check
      _
    $region23: #{tpu_custom_call.1} parent=1 // pred_check_branch
      %76 = sbr.rel (0) target = $region25
    $region24: #{tpu_custom_call.1} parent=1 // pred_region
      %s78 = ssub.s32 256, 256
      %79 = vsyncadd [#allocation4], %s78
      %s80 = sshll.u32 [#allocation7], 4
      %s81 = int_to_ptr.vmem [resolvable:$true] %s80
      %86 = dma.vmem_to_hbm [thread:$0]  %s81, 256, %s2, [#allocation4], 128, 128, 8
    $region25: #{tpu_custom_call.1} parent=1 // pred_fallthru
      _
    // Predicated region
    $region26: #{tpu_custom_call.1} parent=1 // pred_check
      _
    $region27: #{tpu_custom_call.1} parent=1 // pred_check_branch
      %88 = sbr.rel (0) target = $region29
    $region28: #{tpu_custom_call.1} parent=1 // pred_region
      %89 = dma.done [#allocation4], 256
    $region29: #{tpu_custom_call.1} parent=1 // pred_fallthru
      _
    %90 = vsyncpa [#allocation3], 1
    %91 = vsyncpa [#allocation6], 1
    %92 = vsyncpa [#allocation4], 1

</llo_original>
